<compile_context>
chip_gen: v7x
topology: tpu7x:2x2x1
jax: 0.10.0
libtpu: 0.0.40
codegen_flags: <defaults>
</compile_context>

<pallas_src>
import math

import jax
import jax.numpy as jnp
import numpy as np
from jax.experimental import pallas as pl
from jax.experimental.pallas import tpu as pltpu


def _copy_kernel(x_ref, o_ref):
    # Identity copy of one lane-dense (tile_rows, lanes) tile.
    o_ref[...] = x_ref[...]


_TARGET_TILE_BYTES = 8 * 1024 * 1024      # 8 MiB tiles -> ~32 MiB double-buffered in+out
_VMEM_LIMIT_BYTES = 40 * 1024 * 1024      # headroom under v7x 64 MiB / v5e-v6e 128 MiB
_SMALL_BYTES = 512 * 1024                 # below this, the XLA copy beats kernel dispatch
_RAGGED_TILE_CAP_BYTES = 16 * 1024 * 1024


def _round_up(v, m):
    return ((v + m - 1) // m) * m


def _pick_tile_rows(rows, row_bytes):
    """Byte-targeted tile rows (multiple of 8), >=2 grid steps when possible."""
    if rows <= 8:
        return rows                        # block == full rows dim (exempt from /8 rule)
    target = max(8, (_TARGET_TILE_BYTES // row_bytes) // 8 * 8)
    two_step = _round_up(pl.cdiv(rows, 2), 8)   # guarantees >=2 steps for megacore sharding
    return max(8, min(target, two_step))


def _tiled_copy(x2d, tile_r, total_bytes, donate_input):
    rows, cols = x2d.shape
    cost = pl.CostEstimate(flops=0, transcendentals=0,
                           bytes_accessed=2 * total_bytes)
    return pl.pallas_call(
        _copy_kernel,
        out_shape=jax.ShapeDtypeStruct((rows, cols), x2d.dtype),
        grid_spec=pltpu.PrefetchScalarGridSpec(
            num_scalar_prefetch=0,
            grid=(pl.cdiv(rows, tile_r),),
            in_specs=[pl.BlockSpec((tile_r, cols), lambda i: (i, 0))],
            out_specs=pl.BlockSpec((tile_r, cols), lambda i: (i, 0)),
        ),
        compiler_params=pltpu.CompilerParams(
            dimension_semantics=("parallel",),   # shards steps over v7x's 2 TCs
            vmem_limit_bytes=_VMEM_LIMIT_BYTES,
        ),
        cost_estimate=cost,
        input_output_aliases=({0: 0} if donate_input else {}),
    )(x2d)


def pallas_view(x, shape, materialize=True, min_kernel_bytes=_SMALL_BYTES,
                donate_input=False):
    """Equivalent of PyTorch View(shape): x.view((x.shape[0],) + shape).

    materialize=False returns the zero-cost reshape (recommended production path).
    materialize=True routes the bytes through a tiled Pallas identity-copy.
    donate_input=True adds input_output_aliases={0: 0}; only use when the caller
    actually donates x (otherwise the 'fresh buffer' contract is violated).
    """
    b = x.shape[0]
    feat = int(np.prod(x.shape[1:])) if x.ndim > 1 else 1
    shape = tuple(int(s) for s in shape)
    if shape.count(-1) == 1:               # torch .view(-1) inference
        known = int(np.prod([s for s in shape if s != -1])) if len(shape) > 1 else 1
        shape = tuple(feat // known if s == -1 else s for s in shape)
    out_feat = int(np.prod(shape)) if len(shape) > 0 else 1
    assert feat == out_feat, f"View: cannot view {x.shape} as {(b,) + shape}"
    out_shape = (b,) + shape

    if not materialize:
        # .view is metadata-only; this is the true equivalent and costs nothing.
        return x.reshape(out_shape)

    dtype = x.dtype
    itemsize = jnp.dtype(dtype).itemsize
    total = b * feat
    total_bytes = total * itemsize

    # Tiny-input fast path: a single-step pallas_call is pure dispatch/grid
    # overhead; the XLA copy is already at roofline for these sizes.
    if total_bytes < min_kernel_bytes:
        return jnp.asarray(x.reshape(out_shape))

    if total % 128 == 0:
        # Lane-dense path: lanes divides total exactly, so the (rows, lanes)
        # reshape is metadata-only — no jnp.pad and no trailing-slice copy.
        lanes = 128 * math.gcd(total // 128, 8)            # 128 .. 1024
        rows = total // lanes
        tile_r = _pick_tile_rows(rows, lanes * itemsize)
        y2d = _tiled_copy(x.reshape(rows, lanes), tile_r, total_bytes, donate_input)
        return y2d.reshape(out_shape)

    # Ragged fallback (total % 128 != 0): (batch, feat) layout with the block
    # equal to the full last dim (exempt from the 128 rule).  No padding copies;
    # such shapes are tiny/rare in this model.
    x2d = x.reshape(b, feat)
    tile_b = _pick_tile_rows(b, feat * itemsize)
    if tile_b * feat * itemsize > _RAGGED_TILE_CAP_BYTES:
        # TODO(synk): huge non-128-aligned copies should use a manual HBM->HBM
        # DMA (memory_space=pl.ANY + make_async_copy); fall back to XLA for now.
        return jnp.asarray(x.reshape(out_shape))
    y2d = _tiled_copy(x2d, tile_b, total_bytes, donate_input)
    return y2d.reshape(out_shape)


if __name__ == "__main__":
    keys = jax.random.split(jax.random.PRNGKey(0), 4)

    # Small NCHW input consistent with preact_resnet usage: flatten before FC.
    B, C, H, W = 2, 4, 16, 16
    x = jax.random.normal(keys[0], (B, C, H, W), dtype=jnp.float32)
    view_shape = (C * H * W,)          # View((1024,)) — flatten features per batch
    y_ref = x.reshape((B,) + view_shape)

    # Forced Pallas kernel path (lane-aligned, single block since input is tiny).
    y = jax.block_until_ready(pallas_view(x, view_shape, min_kernel_bytes=0))
    assert y.shape == (B,) + view_shape, y.shape
    assert y.dtype == x.dtype
    np.testing.assert_array_equal(np.asarray(y), np.asarray(y_ref))

    # Default path: tiny input takes the XLA fast path (no kernel launch).
    y_fast = jax.block_until_ready(pallas_view(x, view_shape))
    np.testing.assert_array_equal(np.asarray(y_fast), np.asarray(y_ref))

    # Zero-cost non-materialized path (recommended production path).
    y_free = jax.block_until_ready(pallas_view(x, view_shape, materialize=False))
    np.testing.assert_array_equal(np.asarray(y_free), np.asarray(y_ref))

    # Multi-step pipelined grid: 512 KiB -> (128, 1024) slab, 2 x (64, 1024) tiles.
    x_mid = jax.random.normal(keys[1], (4, 8, 32, 128), dtype=jnp.float32)
    y_mid = jax.block_until_ready(
        pallas_view(x_mid, (8 * 32 * 128,), min_kernel_bytes=0))
    np.testing.assert_array_equal(np.asarray(y_mid),
                                  np.asarray(x_mid.reshape(4, 8 * 32 * 128)))

    # Ragged last rows-block: (12, 1024) slab, 8-row tiles, last block masked by Pallas.
    x_rag = jax.random.normal(keys[2], (2, 3, 16, 128), dtype=jnp.float32)
    y_rag = jax.block_until_ready(
        pallas_view(x_rag, (3, 16 * 128), min_kernel_bytes=0))
    np.testing.assert_array_equal(np.asarray(y_rag),
                                  np.asarray(x_rag.reshape(2, 3, 16 * 128)))

    # bf16 input: byte-targeted tiling keeps per-step DMA size healthy for narrow dtypes.
    x_bf = x_mid.astype(jnp.bfloat16)
    y_bf = jax.block_until_ready(pallas_view(x_bf, (-1,), min_kernel_bytes=0))
    np.testing.assert_array_equal(
        np.asarray(y_bf.astype(jnp.float32)),
        np.asarray(x_bf.reshape(4, 8 * 32 * 128).astype(jnp.float32)))

    # total % 128 != 0 fallback: full-feat block, no padding copies.
    x_odd = jax.random.normal(keys[3], (2, 3, 5, 7), dtype=jnp.float32)
    y_odd = jax.block_until_ready(
        pallas_view(x_odd, (3 * 5 * 7,), min_kernel_bytes=0))
    np.testing.assert_array_equal(np.asarray(y_odd), np.asarray(x_odd.reshape(2, 105)))

    print("KERNEL_OK")
</pallas_src>

<mosaic_0001>
module attributes {stable_mosaic.version = 11 : i64} {
  func.func @_copy_kernel(%arg0: i32, %arg1: memref<2x1024xf32, #tpu.memory_space<vmem>>, %arg2: memref<2x1024xf32, #tpu.memory_space<vmem>>) attributes {dimension_semantics = [#tpu.dimension_semantics<parallel>], iteration_bounds = array<i64: 1>, scalar_prefetch = 0 : i64, scratch_operands = 0 : i64, tpu.core_type = #tpu.core_type<tc>, window_params = [{transform_indices = @transform_0, window_bounds = array<i64: 2, 1024>}, {transform_indices = @transform_1, window_bounds = array<i64: 2, 1024>}]} {
    %c0 = arith.constant 0 : index
    %c0_0 = arith.constant 0 : index
    %0 = vector.load %arg1[%c0, %c0_0] : memref<2x1024xf32, #tpu.memory_space<vmem>>, vector<2x1024xf32>
    %c0_1 = arith.constant 0 : index
    %c0_2 = arith.constant 0 : index
    %1 = vector.load %arg2[%c0_1, %c0_2] : memref<2x1024xf32, #tpu.memory_space<vmem>>, vector<2x1024xf32>
    tpu.vector_store %arg2[%c0_1, %c0_2], %0 {strides = array<i32>} : memref<2x1024xf32, #tpu.memory_space<vmem>>, vector<2x1024xf32>,
    return
  }
  func.func @transform_0(%arg0: i32) -> (i32, i32) {
    %c0_i32 = arith.constant 0 : i32
    %c0_i32_0 = arith.constant 0 : i32
    return %arg0, %c0_i32 : i32, i32
  }
  func.func @transform_1(%arg0: i32) -> (i32, i32) {
    %c0_i32 = arith.constant 0 : i32
    %c0_i32_0 = arith.constant 0 : i32
    return %arg0, %c0_i32 : i32, i32
  }
}

</mosaic_0001>

<llo_original>
// kernel: tpu_custom_call.1
$region0: #{tpu_custom_call.1}
  #allocation0 [shape = 'u32[]', space=smem, size = 0x4, offset = 0x4, fixed_abs, tag = 'smem constant byte address 0x4 - core index']
  #allocation1 [shape = 'u32[144,128]{1,0:T(1,128)}', space=vmem, size = 0x12000, scoped, tag = 'internal scratch']
  %s0 = inlined_call_operand.hbm [shape: f32[2,1024], index: 0, kind: input, shape index: {}]
  %s1 = inlined_call_operand.hbm [shape: f32[2,1024], index: 1, kind: output, shape index: {}]
  %s2 = sld [smem:[#allocation0]]
  $region18: #{tpu_custom_call.1} parent=0
    _
  %s4 = ssub.s32 1, %s2
  %s5 = scalar_select 0, %s4, %s2
  $region1: #{tpu_custom_call.1} parent=0
    #allocation2 [shape = 'u8[8192]{0}', space=vmem, size = 0x2000, scoped, tag = 'input window, operand 0, single buffered']
    #allocation3 [shape = 's32[1]{0}', space=sflag, size = 0x4, scoped, tag = 'scoped memory for tpu_custom_call.1']
    #allocation4 [shape = 's32[1]{0}', space=sflag, size = 0x4, scoped, tag = 'scoped memory for tpu_custom_call.1']
    #allocation5 [shape = 'u8[8192]{0}', space=vmem, size = 0x2000, scoped, tag = 'output window, operand 0, single buffered']
    %6 = vsyncpa [#allocation3], 0
    %7 = vsyncpa [#allocation4], 0
    // Predicated region
    $region2: #{tpu_custom_call.1} parent=1 // pred_check
      _
    $region3: #{tpu_custom_call.1} parent=1 // pred_check_branch
      %9 = sbr.rel (0) target = $region5
    $region4: #{tpu_custom_call.1} parent=1 // pred_region
      %s11 = ssub.s32 256, 256
      %12 = vsyncadd [#allocation3], %s11
      %s14 = sshll.u32 [#allocation2], 4
      %s15 = int_to_ptr.vmem [resolvable:$true] %s14
      %17 = dma.hbm_to_vmem [thread:$0]  %s0, 256, %s15, [#allocation3]
    $region5: #{tpu_custom_call.1} parent=1 // pred_fallthru
      _
    // Predicated region
    $region6: #{tpu_custom_call.1} parent=1 // pred_check
      _
    $region7: #{tpu_custom_call.1} parent=1 // pred_check_branch
      %19 = sbr.rel (0) target = $region9
    $region8: #{tpu_custom_call.1} parent=1 // pred_region
      %20 = dma.done [#allocation3], 256
    $region9: #{tpu_custom_call.1} parent=1 // pred_fallthru
      _
    %v21 = vld [vmem:[#allocation2] sm:$0xff]
    %v22 = vld [vmem:[#allocation2 + $0x8] sm:$0xff]
    %23 = vst [vmem:[#allocation5] sm:$0xff] %v21
    %24 = vst [vmem:[#allocation5 + $0x8] sm:$0xff] %v22
    // Predicated region
    $region10: #{tpu_custom_call.1} parent=1 // pred_check
      _
    $region11: #{tpu_custom_call.1} parent=1 // pred_check_branch
      %26 = sbr.rel (0) target = $region13
    $region12: #{tpu_custom_call.1} parent=1 // pred_region
      %s28 = ssub.s32 256, 256
      %29 = vsyncadd [#allocation4], %s28
      %s31 = sshll.u32 [#allocation5], 4
      %s32 = int_to_ptr.vmem [resolvable:$true] %s31
      %34 = dma.vmem_to_hbm [thread:$0]  %s32, 256, %s1, [#allocation4]
    $region13: #{tpu_custom_call.1} parent=1 // pred_fallthru
      _
    // Predicated region
    $region14: #{tpu_custom_call.1} parent=1 // pred_check
      _
    $region15: #{tpu_custom_call.1} parent=1 // pred_check_branch
      %36 = sbr.rel (0) target = $region17
    $region16: #{tpu_custom_call.1} parent=1 // pred_region
      %37 = dma.done [#allocation4], 256
    $region17: #{tpu_custom_call.1} parent=1 // pred_fallthru
      _
    %38 = vsyncpa [#allocation3], 1
    %39 = vsyncpa [#allocation4], 1

</llo_original>
